<compile_context>
chip_gen: v7x
topology: tpu7x:2x2x1
jax: 0.10.0
libtpu: 0.0.40
codegen_flags: <defaults>
</compile_context>

<pallas_src>
import functools

import numpy as np
import jax
import jax.numpy as jnp
from jax.experimental import pallas as pl
from jax.experimental.pallas import tpu as pltpu

_LANES = 128


def _cdiv(a, b):
    return -(-a // b)


def _mse_kernel(a_ref, b_ref, out_ref, acc_ref, *,
                block_rows, blocks_per_split, valid_rows):
    s = pl.program_id(0)          # "parallel" split (both TCs on v7x)
    i = pl.program_id(1)          # sequential accumulation axis

    @pl.when(i == 0)
    def _():
        acc_ref[...] = jnp.zeros_like(acc_ref)

    # Logical (unclamped) block index -> global row ids of this tile.  Rows at
    # or beyond `valid_rows` are either pipeline padding of a partial tail
    # block or a clamped duplicate block; mask their contribution to zero.
    blk = s * blocks_per_split + i
    row0 = blk * block_rows
    row_ids = row0 + jax.lax.broadcasted_iota(jnp.int32, (block_rows, _LANES), 0)
    valid = row_ids < valid_rows

    d = a_ref[...].astype(jnp.float32) - b_ref[...].astype(jnp.float32)
    d2 = jnp.where(valid, d * d, 0.0)

    # Fold (block_rows, 128) into a single (8, 128) vreg accumulator (VPU only).
    acc_ref[...] += jnp.sum(d2.reshape(-1, 8, _LANES), axis=0)

    @pl.when(i == blocks_per_split - 1)
    def _():
        # One sublane reduction + one lane-dense (1, 128) store per split.
        out_ref[...] = jnp.sum(acc_ref[...], axis=0, keepdims=True)


def l_mse(S0, image_fused, *, block_rows=4096, n_splits=2):
    """Loss_MSE = mean((image_fused - S0) ** 2), matching L_MSE.forward."""
    a = jnp.asarray(image_fused)
    b = jnp.asarray(S0)
    assert a.shape == b.shape, "S0 and image_fused must have the same shape"
    if a.dtype != b.dtype:
        ct = jnp.promote_types(a.dtype, b.dtype)
        a, b = a.astype(ct), b.astype(ct)

    n_true = int(np.prod(a.shape))
    itemsize = jnp.dtype(a.dtype).itemsize
    sub = 8 * max(1, 4 // itemsize)   # sublane tile: f32 -> 8, bf16 -> 16, i8/fp8 -> 32

    a = a.reshape(-1)
    b = b.reshape(-1)

    # Lane-dense (rows, 128) view, padded by at most one (sub, 128) tile.
    rows = _cdiv(n_true, _LANES)
    rows = _cdiv(rows, sub) * sub
    n_padded = rows * _LANES
    if n_padded != n_true:            # tiny pad; fusible into the input DMA
        a = jnp.pad(a, (0, n_padded - n_true))
        b = jnp.pad(b, (0, n_padded - n_true))
    a = a.reshape(rows, _LANES)
    b = b.reshape(rows, _LANES)

    block_rows = max(sub, (min(block_rows, rows) // sub) * sub)
    n_blocks = _cdiv(rows, block_rows)
    n_splits = max(1, min(n_splits, n_blocks))
    blocks_per_split = _cdiv(n_blocks, n_splits)

    def in_map(s, i):
        # Clamp so a trailing over-count block re-reads the last real block;
        # its contribution is masked to zero inside the kernel.
        return (jnp.minimum(s * blocks_per_split + i, n_blocks - 1), 0)

    img_spec = pl.BlockSpec((block_rows, _LANES), in_map)
    out_spec = pl.BlockSpec((1, _LANES), lambda s, i: (s, 0))

    kernel = functools.partial(
        _mse_kernel,
        block_rows=block_rows,
        blocks_per_split=blocks_per_split,
        valid_rows=rows,
    )

    partials = pl.pallas_call(
        kernel,
        out_shape=jax.ShapeDtypeStruct((n_splits, _LANES), jnp.float32),
        grid_spec=pltpu.PrefetchScalarGridSpec(
            num_scalar_prefetch=0,
            grid=(n_splits, blocks_per_split),
            in_specs=[img_spec, img_spec],
            out_specs=out_spec,
            scratch_shapes=[pltpu.VMEM((8, _LANES), jnp.float32)]),
        compiler_params=pltpu.CompilerParams(
            dimension_semantics=("parallel", "arbitrary"),
            vmem_limit_bytes=32 * 1024 * 1024,
            allow_input_fusion=[0, 1]),
        cost_estimate=pl.CostEstimate(
            flops=3 * n_true,
            transcendentals=0,
            bytes_accessed=2 * n_true * itemsize + n_splits * _LANES * 4),
    )(a, b)

    # Tiny final cross-lane / cross-split reduce + mean in plain JAX.
    return jnp.sum(partials) / float(n_true)


if __name__ == "__main__":
    key = jax.random.PRNGKey(0)
    k1, k2 = jax.random.split(key, 2)

    # Small image-shaped case (matches the module's typical inputs).
    N, C, H, W = 2, 4, 16, 16
    S0 = jax.random.uniform(k1, (N, C, H, W), jnp.float32)
    image_fused = jax.random.uniform(k2, (N, C, H, W), jnp.float32)

    loss = jax.jit(l_mse)(S0, image_fused)
    jax.block_until_ready(loss)

    ref = float(np.mean((np.asarray(image_fused, np.float64)
                         - np.asarray(S0, np.float64)) ** 2))
    assert np.isclose(float(loss), ref, rtol=1e-4, atol=1e-6), (float(loss), ref)

    # Ragged, multi-block case: exercises tail masking, the clamped duplicate
    # block, and the parallel split axis.
    M = 2 * 4096 * 128 + 333
    xa = jax.random.uniform(k1, (M,), jnp.float32)
    xb = jax.random.uniform(k2, (M,), jnp.float32)
    loss2 = jax.jit(l_mse)(xa, xb)
    jax.block_until_ready(loss2)
    ref2 = float(np.mean((np.asarray(xa, np.float64)
                          - np.asarray(xb, np.float64)) ** 2))
    assert np.isclose(float(loss2), ref2, rtol=1e-4, atol=1e-6), (float(loss2), ref2)

    print("KERNEL_OK")
</pallas_src>

<mosaic_0001>
module attributes {stable_mosaic.version = 11 : i64} {
  func.func @_mse_kernel(%arg0: i32, %arg1: i32, %arg2: memref<16x128xf32, #tpu.memory_space<vmem>>, %arg3: memref<16x128xf32, #tpu.memory_space<vmem>>, %arg4: memref<1x128xf32, #tpu.memory_space<vmem>>, %arg5: memref<8x128xf32, #tpu.memory_space<vmem>>) attributes {dimension_semantics = [#tpu.dimension_semantics<parallel>, #tpu.dimension_semantics<arbitrary>], iteration_bounds = array<i64: 1, 1>, scalar_prefetch = 0 : i64, scratch_operands = 1 : i64, tpu.core_type = #tpu.core_type<tc>, window_params = [{transform_indices = @transform_0, window_bounds = array<i64: 16, 128>}, {transform_indices = @transform_1, window_bounds = array<i64: 16, 128>}, {transform_indices = @transform_2, window_bounds = array<i64: 1, 128>}]} {
    %c0_i32 = arith.constant 0 : i32
    %0 = arith.cmpi eq, %arg1, %c0_i32 : i32
    %1 = arith.extui %0 : i1 to i32
    %c0_i32_0 = arith.constant 0 : i32
    %2 = arith.cmpi ne, %1, %c0_i32_0 : i32
    scf.if %2 {
      %cst_12 = arith.constant 0.000000e+00 : f32
      %25 = vector.broadcast %cst_12 : f32 to vector<8x128xf32>
      %c0_13 = arith.constant 0 : index
      %c0_14 = arith.constant 0 : index
      %26 = vector.load %arg5[%c0_13, %c0_14] : memref<8x128xf32, #tpu.memory_space<vmem>>, vector<8x128xf32>
      tpu.vector_store %arg5[%c0_13, %c0_14], %25 {strides = array<i32>} : memref<8x128xf32, #tpu.memory_space<vmem>>, vector<8x128xf32>,
    } else {
    }
    %c1_i32 = arith.constant 1 : i32
    %3 = arith.muli %arg0, %c1_i32 : i32
    %4 = arith.addi %3, %arg1 : i32
    %c16_i32 = arith.constant 16 : i32
    %5 = arith.muli %4, %c16_i32 : i32
    %6 = tpu.iota {dimensions = array<i32: 0>} : vector<16x128xi32>
    %7 = vector.broadcast %5 : i32 to vector<16x128xi32>
    %8 = arith.addi %7, %6 : vector<16x128xi32>
    %c16_i32_1 = arith.constant 16 : i32
    %9 = vector.broadcast %c16_i32_1 : i32 to vector<16x128xi32>
    %10 = arith.cmpi slt, %8, %9 : vector<16x128xi32>
    %c0 = arith.constant 0 : index
    %c0_2 = arith.constant 0 : index
    %11 = vector.load %arg2[%c0, %c0_2] : memref<16x128xf32, #tpu.memory_space<vmem>>, vector<16x128xf32>
    %c0_3 = arith.constant 0 : index
    %c0_4 = arith.constant 0 : index
    %12 = vector.load %arg3[%c0_3, %c0_4] : memref<16x128xf32, #tpu.memory_space<vmem>>, vector<16x128xf32>
    %13 = arith.subf %11, %12 : vector<16x128xf32>
    %14 = arith.mulf %13, %13 : vector<16x128xf32>
    %cst = arith.constant 0.000000e+00 : f32
    %15 = vector.broadcast %cst : f32 to vector<16x128xf32>
    %16 = arith.select %10, %14, %15 : vector<16x128xi1>, vector<16x128xf32>
    %c0_5 = arith.constant 0 : index
    %c0_6 = arith.constant 0 : index
    %17 = vector.load %arg5[%c0_5, %c0_6] : memref<8x128xf32, #tpu.memory_space<vmem>>, vector<8x128xf32>
    %18 = vector.shape_cast %16 : vector<16x128xf32> to vector<2x8x128xf32>
    %cst_7 = arith.constant dense<0.000000e+00> : vector<8x128xf32>
    %19 = vector.multi_reduction <add>, %18, %cst_7 [0] : vector<2x8x128xf32> to vector<8x128xf32>
    %20 = arith.addf %17, %19 : vector<8x128xf32>
    %c0_8 = arith.constant 0 : index
    %c0_9 = arith.constant 0 : index
    %21 = vector.load %arg5[%c0_8, %c0_9] : memref<8x128xf32, #tpu.memory_space<vmem>>, vector<8x128xf32>
    tpu.vector_store %arg5[%c0_8, %c0_9], %20 {strides = array<i32>} : memref<8x128xf32, #tpu.memory_space<vmem>>, vector<8x128xf32>,
    %c0_i32_10 = arith.constant 0 : i32
    %22 = arith.cmpi eq, %arg1, %c0_i32_10 : i32
    %23 = arith.extui %22 : i1 to i32
    %c0_i32_11 = arith.constant 0 : i32
    %24 = arith.cmpi ne, %23, %c0_i32_11 : i32
    scf.if %24 {
      %c0_12 = arith.constant 0 : index
      %c0_13 = arith.constant 0 : index
      %25 = vector.load %arg5[%c0_12, %c0_13] : memref<8x128xf32, #tpu.memory_space<vmem>>, vector<8x128xf32>
      %cst_14 = arith.constant dense<0.000000e+00> : vector<128xf32>
      %26 = vector.multi_reduction <add>, %25, %cst_14 [0] : vector<8x128xf32> to vector<128xf32>
      %27 = vector.shape_cast %26 : vector<128xf32> to vector<1x128xf32>
      %c0_15 = arith.constant 0 : index
      %c0_16 = arith.constant 0 : index
      %28 = vector.load %arg4[%c0_15, %c0_16] : memref<1x128xf32, #tpu.memory_space<vmem>>, vector<1x128xf32>
      tpu.vector_store %arg4[%c0_15, %c0_16], %27 {strides = array<i32>} : memref<1x128xf32, #tpu.memory_space<vmem>>, vector<1x128xf32>,
    } else {
    }
    return
  }
  func.func @transform_0(%arg0: i32, %arg1: i32) -> (i32, i32) {
    %c1_i32 = arith.constant 1 : i32
    %0 = arith.muli %arg0, %c1_i32 : i32
    %1 = arith.addi %0, %arg1 : i32
    %c0_i32 = arith.constant 0 : i32
    %2 = arith.minsi %1, %c0_i32 : i32
    %c0_i32_0 = arith.constant 0 : i32
    %c0_i32_1 = arith.constant 0 : i32
    return %2, %c0_i32_0 : i32, i32
  }
  func.func @transform_1(%arg0: i32, %arg1: i32) -> (i32, i32) {
    %c1_i32 = arith.constant 1 : i32
    %0 = arith.muli %arg0, %c1_i32 : i32
    %1 = arith.addi %0, %arg1 : i32
    %c0_i32 = arith.constant 0 : i32
    %2 = arith.minsi %1, %c0_i32 : i32
    %c0_i32_0 = arith.constant 0 : i32
    %c0_i32_1 = arith.constant 0 : i32
    return %2, %c0_i32_0 : i32, i32
  }
  func.func @transform_2(%arg0: i32, %arg1: i32) -> (i32, i32) {
    %c0_i32 = arith.constant 0 : i32
    %c0_i32_0 = arith.constant 0 : i32
    return %arg0, %c0_i32 : i32, i32
  }
}

</mosaic_0001>

<llo_original>
// kernel: l_mse.1
$region0: #{l_mse.1}
  #allocation0 [shape = 'u32[]', space=smem, size = 0x4, offset = 0x4, fixed_abs, tag = 'smem constant byte address 0x4 - core index']
  #allocation1 [shape = 'u32[144,128]{1,0:T(1,128)}', space=vmem, size = 0x12000, scoped, tag = 'internal scratch']
  #allocation2 [shape = 'f32[8,128]{1,0:T(8,128)}', space=vmem, size = 0x1000, scoped, tag = 'scratch operand']
  %s0 = inlined_call_operand.vmem [shape: f32[16,128], index: 0, kind: input, shape index: {}]
  %s1 = inlined_call_operand.vmem [shape: f32[16,128], index: 1, kind: input, shape index: {}]
  %s2 = inlined_call_operand.vmem [shape: f32[1,128], index: 2, kind: output, shape index: {}]
  %s3 = sld [smem:[#allocation0]]
  $region26: #{l_mse.1} parent=0
    _
  %s5 = ssub.s32 1, %s3
  %s6 = scalar_select 0, %s5, %s3
  // Predicated region
  $region2: #{l_mse.1} parent=0 // pred_check
    _
  $region3: #{l_mse.1} parent=0 // pred_check_branch
    %8 = sbr.rel (0) target = $region5
  $region4: #{l_mse.1} parent=0 // pred_region
    %s9 = sadd.s32 0, 0
    %p10 = scmp.lt.s32.totalorder %s9, 0
    %s11 = scalar_select %p10, %s9, 0
    %s12 = smul.u32 2, %s11
    %p13 = scmp.lt.s32.totalorder %s12, 1
    %s14 = scalar_select %p13, %s12, 1
    %s15 = smul.addr %s14, 8
    %s16 = scalar_lea.vmem %s0, %s15
    %s17 = sadd.s32 0, 0
    %p18 = scmp.lt.s32.totalorder %s17, 0
    %s19 = scalar_select %p18, %s17, 0
    %s20 = smul.u32 2, %s19
  $region5: #{l_mse.1} parent=0 // pred_fallthru
    _
  // Predicated region
  $region6: #{l_mse.1} parent=0 // pred_check
    _
  $region7: #{l_mse.1} parent=0 // pred_check_branch
    %22 = sbr.rel (0) target = $region9
  $region8: #{l_mse.1} parent=0 // pred_region
    %s23 = sadd.s32 0, 0
    %p24 = scmp.lt.s32.totalorder %s23, 0
    %s25 = scalar_select %p24, %s23, 0
    %s26 = smul.u32 2, %s25
    %p27 = scmp.lt.s32.totalorder %s26, 1
    %s28 = scalar_select %p27, %s26, 1
    %s29 = smul.addr %s28, 8
    %s30 = scalar_lea.vmem %s1, %s29
    %s31 = sadd.s32 0, 0
    %p32 = scmp.lt.s32.totalorder %s31, 0
    %s33 = scalar_select %p32, %s31, 0
    %s34 = smul.u32 2, %s33
  $region9: #{l_mse.1} parent=0 // pred_fallthru
    _
  %s35 = sadd.s32 0, 0
  %p36 = scmp.lt.s32.totalorder %s35, 0
  %s37 = scalar_select %p36, %s35, 0
  %s38 = smul.u32 2, %s37
  %p39 = scmp.lt.s32.totalorder %s38, 1
  %s40 = scalar_select %p39, %s38, 1
  %s41 = smul.addr %s40, 8
  %s42 = scalar_lea.vmem %s0, %s41
  %s43 = sadd.s32 0, 0
  %p44 = scmp.lt.s32.totalorder %s43, 0
  %s45 = scalar_select %p44, %s43, 0
  %s46 = smul.u32 2, %s45
  %p47 = scmp.lt.s32.totalorder %s46, 1
  %s48 = scalar_select %p47, %s46, 1
  %s49 = smul.addr %s48, 8
  %s50 = scalar_lea.vmem %s1, %s49
  %s51 = sadd.s32 0, 0
  %p52 = scmp.lt.s32.totalorder %s51, 0
  %s53 = scalar_select %p52, %s51, 0
  %s54 = smul.u32 2, %s53
  %p55 = scmp.lt.s32.totalorder %s54, 1
  %s56 = scalar_select %p55, %s54, 1
  %s57 = smul.addr %s56, 8
  %s58 = scalar_lea.vmem %s0, %s57
  %s59 = sadd.s32 0, 0
  %p60 = scmp.lt.s32.totalorder %s59, 0
  %s61 = scalar_select %p60, %s59, 0
  %s62 = smul.u32 2, %s61
  %s63 = sadd.s32 0, 0
  %p64 = scmp.lt.s32.totalorder %s63, 0
  %s65 = scalar_select %p64, %s63, 0
  %s66 = smul.u32 2, %s65
  %p67 = scmp.lt.s32.totalorder %s66, 1
  %s68 = scalar_select %p67, %s66, 1
  %s69 = smul.addr %s68, 8
  %s70 = scalar_lea.vmem %s1, %s69
  %s71 = sadd.s32 0, 0
  %p72 = scmp.lt.s32.totalorder %s71, 0
  %s73 = scalar_select %p72, %s71, 0
  %s74 = smul.u32 2, %s73
  %p75 = scmp.eq.s32.totalorder 0, 0
  // Predicated region
  $region10: #{l_mse.1} parent=0 // pred_check
    %p76 = pneg %p75
  $region11: #{l_mse.1} parent=0 // pred_check_branch
    %78 = sbr.rel (%p76) target = $region13
  $region12: #{l_mse.1} parent=0 // pred_region
    %79 = vst [vmem:[#allocation2] sm:$0xff] 0.0
  $region13: #{l_mse.1} parent=0 // pred_fallthru
    _
  %s80 = sadd.s32 0, 0
  %s81 = smul.u32 %s80, 16
  %v82 = vlaneseq
  %v83 = vshrl.u32 %v82, 7
  %v84 = vadd.s32 %v83, 8
  %v85 = vstv %s81
  %v86 = vadd.s32 %v85, %v83
  %v87 = vadd.s32 %v85, %v84
  %vm88 = vcmp.lt.s32.totalorder %v86, 16
  %vm89 = vcmp.lt.s32.totalorder %v87, 16
  %v90 = vld [vmem:[%s58] sm:$0xff]
  %v91 = vld [vmem:[%s58 + $0x8] sm:$0xff]
  %v92 = vld [vmem:[%s70] sm:$0xff]
  %v93 = vld [vmem:[%s70 + $0x8] sm:$0xff]
  %v94 = vsub.f32 %v90, %v92
  %v95 = vsub.f32 %v91, %v93
  %v96 = vmul.f32 %v94, %v94
  %v97 = vmul.f32 %v95, %v95
  %v98 = vsel %vm88, %v96, 0.0
  %v99 = vsel %vm89, %v97, 0.0
  %v100 = vld [vmem:[#allocation2] sm:$0xff]
  %v101 = vadd.f32 %v98, %v99
  %v102 = vadd.f32 %v100, %v101
  %103 = vst [vmem:[#allocation2] sm:$0xff] %v102
  // Predicated region
  $region14: #{l_mse.1} parent=0 // pred_check
    %p104 = pneg %p75
  $region15: #{l_mse.1} parent=0 // pred_check_branch
    %106 = sbr.rel (%p104) target = $region17
  $region16: #{l_mse.1} parent=0 // pred_region
    %v107 = vld [vmem:[#allocation2] sm:$0xff]
    %v108 = vrot.slane %v107, 4
    %v109 = vadd.f32 %v107, %v108
    %v110 = vrot.slane %v109, 2
    %v111 = vadd.f32 %v109, %v110
    %v112 = vrot.slane %v111, 1
    %v113 = vadd.f32 %v111, %v112
    %114 = vst [vmem:[%s2] sm:$0x1] %v113
  $region17: #{l_mse.1} parent=0 // pred_fallthru
    _
  // Predicated region
  $region18: #{l_mse.1} parent=0 // pred_check
    _
  $region19: #{l_mse.1} parent=0 // pred_check_branch
    %116 = sbr.rel (0) target = $region21
  $region20: #{l_mse.1} parent=0 // pred_region
    _
  $region21: #{l_mse.1} parent=0 // pred_fallthru
    _
  // Predicated region
  $region22: #{l_mse.1} parent=0 // pred_check
    _
  $region23: #{l_mse.1} parent=0 // pred_check_branch
    %118 = sbr.rel (0) target = $region25
  $region24: #{l_mse.1} parent=0 // pred_region
    _
  $region25: #{l_mse.1} parent=0 // pred_fallthru
    _

</llo_original>
